<compile_context>
chip_gen: v5e
topology: v5e:2x2
jax: 0.10.0
libtpu: 0.0.40
codegen_flags: <defaults>
</compile_context>

<pallas_src>
import jax
import jax.numpy as jnp
from jax.experimental import pallas as pl
from jax.experimental.pallas import tpu as pltpu

EMBED_SIZE = 768
D_FF = 64
DFF_PAD = 128          # zero-padded hidden dim (lane-dense, MXU aligned)
LN_EPS = 1e-5


def ffn_kernel(x_ref, w1_ref, b1_ref, w2_ref, b2_ref, g_ref, beta_ref, o_ref):
    # x_ref: (TM, E) io dtype      w1_ref: (E, DFF_PAD) mm dtype   b1_ref: (1, DFF_PAD) f32
    # w2_ref: (DFF_PAD, E) mm dtype  b2/g/beta: (1, E) f32          o_ref: (TM, E) io dtype
    x = x_ref[...]
    xf = x.astype(jnp.float32)            # residual / LayerNorm path in f32
    xm = x.astype(w1_ref.dtype)           # matmul operand dtype (bf16 or f32)

    # fc1 = relu(x @ W1 + b1_total)   -- (TM, E) @ (E, 128) on the MXU, f32 accumulate
    h = jnp.dot(xm, w1_ref[...], preferred_element_type=jnp.float32) + b1_ref[...]
    h = jnp.maximum(h, 0.0)

    # fc2 = h @ W2 + b2_total         -- (TM, 128) @ (128, E) on the MXU, f32 accumulate
    y = jnp.dot(h.astype(w2_ref.dtype), w2_ref[...],
                preferred_element_type=jnp.float32) + b2_ref[...]

    # residual + LayerNorm over embed axis (one-pass f32 statistics)
    z = y + xf
    mean = jnp.mean(z, axis=-1, keepdims=True)
    mean_sq = jnp.mean(z * z, axis=-1, keepdims=True)
    var = mean_sq - mean * mean
    zn = (z - mean) * jax.lax.rsqrt(var + LN_EPS)
    o_ref[...] = (zn * g_ref[...] + beta_ref[...]).astype(o_ref.dtype)


def _round_up(n, m):
    return (n + m - 1) // m * m


def _choose_tm(M, tm_cap=1024, min_steps=4):
    # Aim for >= min_steps grid steps (>= 2 per TensorCore on v7x) while capping
    # the tile size; tile rows always a multiple of 8 (sublane alignment).
    return max(8, min(tm_cap, _round_up(-(-M // min_steps), 8)))


def feed_forward(x, w1, b1_total, w2, b2_total, gamma, beta, *, tm_cap=1024):
    """x: (B, S, E), f32 or bf16. w1: (E, D_FF), w2: (D_FF, E) (already (in, out))."""
    B, S, E = x.shape
    assert E == EMBED_SIZE
    M = B * S
    x2 = x.reshape(M, E)

    io_dtype = x.dtype
    # bf16 matmul operands when activations are bf16 (v5e MXU fast path); else f32.
    mm_dtype = jnp.bfloat16 if x.dtype == jnp.bfloat16 else jnp.float32

    # Zero-pad hidden dim 64 -> 128 (bit-identical: relu(0 + 0) = 0 columns, zero W2 rows).
    w1p = jnp.pad(w1.astype(mm_dtype), ((0, 0), (0, DFF_PAD - D_FF)))          # (E, 128)
    b1p = jnp.pad(b1_total.astype(jnp.float32),
                  ((0, DFF_PAD - D_FF),)).reshape(1, DFF_PAD)                  # (1, 128)
    w2p = jnp.pad(w2.astype(mm_dtype), ((0, DFF_PAD - D_FF), (0, 0)))          # (128, E)
    b2r = b2_total.reshape(1, E).astype(jnp.float32)
    gr = gamma.reshape(1, E).astype(jnp.float32)
    br = beta.reshape(1, E).astype(jnp.float32)

    tm = _choose_tm(M, tm_cap=tm_cap)
    grid = (pl.cdiv(M, tm),)

    itemsize_io = jnp.dtype(io_dtype).itemsize
    itemsize_mm = jnp.dtype(mm_dtype).itemsize
    cost = pl.CostEstimate(
        flops=4 * M * E * DFF_PAD,                      # two matmuls, 2 flops/MAC
        transcendentals=M,                              # one rsqrt per row
        bytes_accessed=2 * M * E * itemsize_io + (w1p.size + w2p.size) * itemsize_mm,
    )

    out = pl.pallas_call(
        ffn_kernel,
        out_shape=jax.ShapeDtypeStruct((M, E), io_dtype),
        grid_spec=pltpu.PrefetchScalarGridSpec(
            num_scalar_prefetch=0,
            grid=grid,
            in_specs=[
                pl.BlockSpec((tm, E), lambda i: (i, 0)),        # x rows (streamed)
                pl.BlockSpec((E, DFF_PAD), lambda i: (0, 0)),   # W1 (resident)
                pl.BlockSpec((1, DFF_PAD), lambda i: (0, 0)),   # b1
                pl.BlockSpec((DFF_PAD, E), lambda i: (0, 0)),   # W2 (resident)
                pl.BlockSpec((1, E), lambda i: (0, 0)),         # b2
                pl.BlockSpec((1, E), lambda i: (0, 0)),         # gamma
                pl.BlockSpec((1, E), lambda i: (0, 0)),         # beta
            ],
            out_specs=pl.BlockSpec((tm, E), lambda i: (i, 0)),
        ),
        compiler_params=pltpu.CompilerParams(
            dimension_semantics=("parallel",),          # shards row tiles across v7x's 2 TCs
            vmem_limit_bytes=32 * 1024 * 1024,
        ),
        cost_estimate=cost,
    )(x2, w1p, b1p, w2p, b2r, gr, br)

    return out.reshape(B, S, E)


def _ref(x, w1, b1_total, w2, b2_total, gamma, beta):
    h = jnp.maximum(x @ w1 + b1_total, 0.0)
    y = h @ w2 + b2_total
    z = y + x
    mean = jnp.mean(z, axis=-1, keepdims=True)
    var = jnp.mean((z - mean) ** 2, axis=-1, keepdims=True)
    return (z - mean) * jax.lax.rsqrt(var + LN_EPS) * gamma + beta


if __name__ == "__main__":
    key = jax.random.PRNGKey(0)
    kx, kw1, kb1l, kw2, kb2l, kb1, kb2, kx2, kx3 = jax.random.split(key, 9)

    E = EMBED_SIZE

    # nn.Linear(embed_size, d_ff): weight (d_ff, embed) ~ U(-1/sqrt(in), 1/sqrt(in)), bias same.
    lim1 = 1.0 / (E ** 0.5)
    w1_t = jax.random.uniform(kw1, (D_FF, E), minval=-lim1, maxval=lim1)
    b1_lin = jax.random.uniform(kb1l, (D_FF,), minval=-lim1, maxval=lim1)
    lim2 = 1.0 / (D_FF ** 0.5)
    w2_t = jax.random.uniform(kw2, (E, D_FF), minval=-lim2, maxval=lim2)
    b2_lin = jax.random.uniform(kb2l, (E,), minval=-lim2, maxval=lim2)

    # extra biases from torch.rand (uniform [0,1))
    b1_extra = jax.random.uniform(kb1, (D_FF,))
    b2_extra = jax.random.uniform(kb2, (E,))

    # transpose weights to (in, out) layout for the kernel; fold the two biases together
    w1 = w1_t.T          # (E, D_FF)
    w2 = w2_t.T          # (D_FF, E)
    b1_total = b1_lin + b1_extra
    b2_total = b2_lin + b2_extra

    # fresh nn.LayerNorm(embed_size): gamma=1, beta=0
    gamma = jnp.ones((E,), dtype=jnp.float32)
    beta = jnp.zeros((E,), dtype=jnp.float32)

    # --- case 1: small f32 (batch=2, seq=8, embed=768) -> tm=8, grid=2 ---
    B, S = 2, 8
    x = jax.random.normal(kx, (B, S, E), dtype=jnp.float32)
    out = jax.block_until_ready(feed_forward(x, w1, b1_total, w2, b2_total, gamma, beta))
    ref = _ref(x, w1, b1_total, w2, b2_total, gamma, beta)
    assert out.shape == (B, S, E)
    assert jnp.allclose(out, ref, atol=1e-4, rtol=1e-4)

    # --- case 2: f32, M=210 not divisible by tile (tm=56, grid=4, ragged last block) ---
    B2, S2 = 3, 70
    x2 = jax.random.normal(kx2, (B2, S2, E), dtype=jnp.float32)
    out2 = jax.block_until_ready(feed_forward(x2, w1, b1_total, w2, b2_total, gamma, beta))
    ref2 = _ref(x2, w1, b1_total, w2, b2_total, gamma, beta)
    assert out2.shape == (B2, S2, E)
    assert jnp.allclose(out2, ref2, atol=1e-4, rtol=1e-4)

    # --- case 3: bf16 activation I/O + bf16 matmul operands (f32 accumulate / LN stats) ---
    B3, S3 = 4, 200      # M=800 -> tm=200, grid=4
    x3 = jax.random.normal(kx3, (B3, S3, E), dtype=jnp.float32).astype(jnp.bfloat16)
    out3 = jax.block_until_ready(feed_forward(x3, w1, b1_total, w2, b2_total, gamma, beta))
    ref3 = _ref(x3.astype(jnp.float32), w1, b1_total, w2, b2_total, gamma, beta)
    assert out3.shape == (B3, S3, E)
    assert out3.dtype == jnp.bfloat16
    # bf16 I/O + bf16 matmul operands loosen tolerance vs the f32 reference.
    assert jnp.allclose(out3.astype(jnp.float32), ref3, atol=5e-2, rtol=5e-2)

    print("KERNEL_OK")
</pallas_src>

<mosaic_0001>
module attributes {stable_mosaic.version = 11 : i64} {
  func.func @ffn_kernel(%arg0: i32, %arg1: memref<8x768xf32, #tpu.memory_space<vmem>>, %arg2: memref<768x128xf32, #tpu.memory_space<vmem>>, %arg3: memref<1x128xf32, #tpu.memory_space<vmem>>, %arg4: memref<128x768xf32, #tpu.memory_space<vmem>>, %arg5: memref<1x768xf32, #tpu.memory_space<vmem>>, %arg6: memref<1x768xf32, #tpu.memory_space<vmem>>, %arg7: memref<1x768xf32, #tpu.memory_space<vmem>>, %arg8: memref<8x768xf32, #tpu.memory_space<vmem>>) attributes {dimension_semantics = [#tpu.dimension_semantics<parallel>], iteration_bounds = array<i64: 2>, scalar_prefetch = 0 : i64, scratch_operands = 0 : i64, tpu.core_type = #tpu.core_type<tc>, window_params = [{transform_indices = @transform_0, window_bounds = array<i64: 8, 768>}, {pipeline_mode = #tpu.pipeline_mode<synchronous>, transform_indices = @transform_1, window_bounds = array<i64: 768, 128>}, {pipeline_mode = #tpu.pipeline_mode<synchronous>, transform_indices = @transform_2, window_bounds = array<i64: 1, 128>}, {pipeline_mode = #tpu.pipeline_mode<synchronous>, transform_indices = @transform_3, window_bounds = array<i64: 128, 768>}, {pipeline_mode = #tpu.pipeline_mode<synchronous>, transform_indices = @transform_4, window_bounds = array<i64: 1, 768>}, {pipeline_mode = #tpu.pipeline_mode<synchronous>, transform_indices = @transform_5, window_bounds = array<i64: 1, 768>}, {pipeline_mode = #tpu.pipeline_mode<synchronous>, transform_indices = @transform_6, window_bounds = array<i64: 1, 768>}, {transform_indices = @transform_7, window_bounds = array<i64: 8, 768>}]} {
    %c0 = arith.constant 0 : index
    %c0_0 = arith.constant 0 : index
    %0 = vector.load %arg1[%c0, %c0_0] : memref<8x768xf32, #tpu.memory_space<vmem>>, vector<8x768xf32>
    %c0_1 = arith.constant 0 : index
    %c0_2 = arith.constant 0 : index
    %1 = vector.load %arg2[%c0_1, %c0_2] : memref<768x128xf32, #tpu.memory_space<vmem>>, vector<768x128xf32>
    %cst = arith.constant dense<0.000000e+00> : vector<8x128xf32>
    %2 = tpu.matmul %0, %1, %cst {dimension_numbers = #tpu.dot_dimension_numbers<[1], [0], [0], [1], [0, 0, 1, 1], [], []>} : vector<8x768xf32>, vector<768x128xf32>, vector<8x128xf32> -> vector<8x128xf32>
    %c0_3 = arith.constant 0 : index
    %c0_4 = arith.constant 0 : index
    %3 = vector.load %arg3[%c0_3, %c0_4] : memref<1x128xf32, #tpu.memory_space<vmem>>, vector<1x128xf32>
    %4 = vector.broadcast %3 : vector<1x128xf32> to vector<8x128xf32>
    %5 = arith.addf %2, %4 : vector<8x128xf32>
    %cst_5 = arith.constant 0.000000e+00 : f32
    %6 = vector.broadcast %cst_5 : f32 to vector<8x128xf32>
    %7 = arith.maximumf %5, %6 : vector<8x128xf32>
    %c0_6 = arith.constant 0 : index
    %c0_7 = arith.constant 0 : index
    %8 = vector.load %arg4[%c0_6, %c0_7] : memref<128x768xf32, #tpu.memory_space<vmem>>, vector<128x768xf32>
    %cst_8 = arith.constant dense<0.000000e+00> : vector<8x768xf32>
    %9 = tpu.matmul %7, %8, %cst_8 {dimension_numbers = #tpu.dot_dimension_numbers<[1], [0], [0], [1], [0, 0, 1, 1], [], []>} : vector<8x128xf32>, vector<128x768xf32>, vector<8x768xf32> -> vector<8x768xf32>
    %c0_9 = arith.constant 0 : index
    %c0_10 = arith.constant 0 : index
    %10 = vector.load %arg5[%c0_9, %c0_10] : memref<1x768xf32, #tpu.memory_space<vmem>>, vector<1x768xf32>
    %11 = vector.broadcast %10 : vector<1x768xf32> to vector<8x768xf32>
    %12 = arith.addf %9, %11 : vector<8x768xf32>
    %13 = arith.addf %12, %0 : vector<8x768xf32>
    %cst_11 = arith.constant dense<0.000000e+00> : vector<8xf32>
    %14 = vector.multi_reduction <add>, %13, %cst_11 [1] : vector<8x768xf32> to vector<8xf32>
    %15 = vector.shape_cast %14 : vector<8xf32> to vector<8x1xf32>
    %cst_12 = arith.constant 7.680000e+02 : f32
    %16 = vector.broadcast %cst_12 : f32 to vector<8x1xf32>
    %17 = arith.divf %15, %16 : vector<8x1xf32>
    %18 = arith.mulf %13, %13 : vector<8x768xf32>
    %cst_13 = arith.constant dense<0.000000e+00> : vector<8xf32>
    %19 = vector.multi_reduction <add>, %18, %cst_13 [1] : vector<8x768xf32> to vector<8xf32>
    %20 = vector.shape_cast %19 : vector<8xf32> to vector<8x1xf32>
    %cst_14 = arith.constant 7.680000e+02 : f32
    %21 = vector.broadcast %cst_14 : f32 to vector<8x1xf32>
    %22 = arith.divf %20, %21 : vector<8x1xf32>
    %23 = arith.mulf %17, %17 : vector<8x1xf32>
    %24 = arith.subf %22, %23 : vector<8x1xf32>
    %25 = vector.broadcast %17 : vector<8x1xf32> to vector<8x768xf32>
    %26 = arith.subf %13, %25 : vector<8x768xf32>
    %cst_15 = arith.constant 9.99999974E-6 : f32
    %27 = vector.broadcast %cst_15 : f32 to vector<8x1xf32>
    %28 = arith.addf %24, %27 : vector<8x1xf32>
    %29 = math.rsqrt %28 : vector<8x1xf32>
    %30 = vector.broadcast %29 : vector<8x1xf32> to vector<8x768xf32>
    %31 = arith.mulf %26, %30 : vector<8x768xf32>
    %c0_16 = arith.constant 0 : index
    %c0_17 = arith.constant 0 : index
    %32 = vector.load %arg6[%c0_16, %c0_17] : memref<1x768xf32, #tpu.memory_space<vmem>>, vector<1x768xf32>
    %33 = vector.broadcast %32 : vector<1x768xf32> to vector<8x768xf32>
    %34 = arith.mulf %31, %33 : vector<8x768xf32>
    %c0_18 = arith.constant 0 : index
    %c0_19 = arith.constant 0 : index
    %35 = vector.load %arg7[%c0_18, %c0_19] : memref<1x768xf32, #tpu.memory_space<vmem>>, vector<1x768xf32>
    %36 = vector.broadcast %35 : vector<1x768xf32> to vector<8x768xf32>
    %37 = arith.addf %34, %36 : vector<8x768xf32>
    %c0_20 = arith.constant 0 : index
    %c0_21 = arith.constant 0 : index
    %38 = vector.load %arg8[%c0_20, %c0_21] : memref<8x768xf32, #tpu.memory_space<vmem>>, vector<8x768xf32>
    tpu.vector_store %arg8[%c0_20, %c0_21], %37 {strides = array<i32>} : memref<8x768xf32, #tpu.memory_space<vmem>>, vector<8x768xf32>,
    return
  }
  func.func @transform_0(%arg0: i32) -> (i32, i32) {
    %c0_i32 = arith.constant 0 : i32
    %c0_i32_0 = arith.constant 0 : i32
    return %arg0, %c0_i32 : i32, i32
  }
  func.func @transform_1(%arg0: i32) -> (i32, i32) {
    %c0_i32 = arith.constant 0 : i32
    %c0_i32_0 = arith.constant 0 : i32
    %c0_i32_1 = arith.constant 0 : i32
    return %c0_i32, %c0_i32_0 : i32, i32
  }
  func.func @transform_2(%arg0: i32) -> (i32, i32) {
    %c0_i32 = arith.constant 0 : i32
    %c0_i32_0 = arith.constant 0 : i32
    %c0_i32_1 = arith.constant 0 : i32
    return %c0_i32, %c0_i32_0 : i32, i32
  }
  func.func @transform_3(%arg0: i32) -> (i32, i32) {
    %c0_i32 = arith.constant 0 : i32
    %c0_i32_0 = arith.constant 0 : i32
    %c0_i32_1 = arith.constant 0 : i32
    return %c0_i32, %c0_i32_0 : i32, i32
  }
  func.func @transform_4(%arg0: i32) -> (i32, i32) {
    %c0_i32 = arith.constant 0 : i32
    %c0_i32_0 = arith.constant 0 : i32
    %c0_i32_1 = arith.constant 0 : i32
    return %c0_i32, %c0_i32_0 : i32, i32
  }
  func.func @transform_5(%arg0: i32) -> (i32, i32) {
    %c0_i32 = arith.constant 0 : i32
    %c0_i32_0 = arith.constant 0 : i32
    %c0_i32_1 = arith.constant 0 : i32
    return %c0_i32, %c0_i32_0 : i32, i32
  }
  func.func @transform_6(%arg0: i32) -> (i32, i32) {
    %c0_i32 = arith.constant 0 : i32
    %c0_i32_0 = arith.constant 0 : i32
    %c0_i32_1 = arith.constant 0 : i32
    return %c0_i32, %c0_i32_0 : i32, i32
  }
  func.func @transform_7(%arg0: i32) -> (i32, i32) {
    %c0_i32 = arith.constant 0 : i32
    %c0_i32_0 = arith.constant 0 : i32
    return %arg0, %c0_i32 : i32, i32
  }
}

</mosaic_0001>

<llo_original>
// kernel: tpu_custom_call.1
$region0: #{tpu_custom_call.1}
  #allocation0 [shape = 'u32[]', space=smem, size = 0x4, offset = 0x4, fixed_abs, tag = 'smem constant byte address 0x4 - core index']
  #allocation1 [shape = 'u32[72,128]{1,0:T(1,128)}', space=vmem, size = 0x9000, scoped, tag = 'internal scratch']
  %s0 = inlined_call_operand.hbm [shape: f32[16,768], index: 0, kind: input, shape index: {}]
  %s1 = inlined_call_operand.hbm [shape: f32[768,128], index: 1, kind: input, shape index: {}]
  %s2 = inlined_call_operand.vmem [shape: f32[1,128], index: 2, kind: input, shape index: {}]
  %s3 = inlined_call_operand.hbm [shape: f32[128,768], index: 3, kind: input, shape index: {}]
  %s4 = inlined_call_operand.hbm [shape: f32[1,768], index: 4, kind: input, shape index: {}]
  %s5 = inlined_call_operand.hbm [shape: f32[1,768], index: 5, kind: input, shape index: {}]
  %s6 = inlined_call_operand.hbm [shape: f32[1,768], index: 6, kind: input, shape index: {}]
  %s7 = inlined_call_operand.hbm [shape: f32[16,768], index: 7, kind: output, shape index: {}]
  %s8 = sld [smem:[#allocation0]]
  $region85: #{tpu_custom_call.1} parent=0
    _
  %s10 = ssub.s32 1, %s8
  %s11 = scalar_select 0, %s10, %s8
  $region1: #{tpu_custom_call.1} parent=0
    #allocation2 [shape = 'u8[49152]{0}', space=vmem, size = 0xc000, scoped, tag = 'input window, operand 0']
    #allocation3 [shape = 's32[2]{0}', space=sflag, size = 0x8, scoped, tag = 'scoped memory for tpu_custom_call.1']
    #allocation4 [shape = 's32[2]{0}', space=sflag, size = 0x8, scoped, tag = 'scoped memory for tpu_custom_call.1']
    #allocation5 [shape = 'u8[393216]{0}', space=vmem, size = 0x60000, scoped, tag = 'input window, operand 1, single buffered']
    #allocation6 [shape = 's32[1]{0}', space=sflag, size = 0x4, scoped, tag = 'scoped memory for tpu_custom_call.1']
    #allocation7 [shape = 'u8[393216]{0}', space=vmem, size = 0x60000, scoped, tag = 'input window, operand 3, single buffered']
    #allocation8 [shape = 'u8[3072]{0}', space=vmem, size = 0xc00, scoped, tag = 'input window, operand 4, single buffered']
    #allocation9 [shape = 's32[1]{0}', space=sflag, size = 0x4, scoped, tag = 'scoped memory for tpu_custom_call.1']
    #allocation10 [shape = 'u8[3072]{0}', space=vmem, size = 0xc00, scoped, tag = 'input window, operand 5, single buffered']
    #allocation11 [shape = 'u8[3072]{0}', space=vmem, size = 0xc00, scoped, tag = 'input window, operand 6, single buffered']
    #allocation12 [shape = 's32[1]{0}', space=sflag, size = 0x4, scoped, tag = 'scoped memory for tpu_custom_call.1']
    #allocation13 [shape = 'u8[49152]{0}', space=vmem, size = 0xc000, scoped, tag = 'output window, operand 0']
    %12 = vsyncpa [#allocation3], 0
    %s13 = scalar_lea.sflag [#allocation3], 1
    %14 = vsyncpa %s13, 0
    %15 = vsyncpa [#allocation6], 0
    %16 = vsyncpa [#allocation9], 0
    %17 = vsyncpa [#allocation12], 0
    %18 = vsyncpa [#allocation4], 0
    %s19 = scalar_lea.sflag [#allocation4], 1
    %20 = vsyncpa %s19, 0
    loop: start=0, step=1, limit=4
    $region2: #{tpu_custom_call.1} parent=1 // loop_pre_header
      _
    $region3: #{tpu_custom_call.1} parent=1 // loop_header
      %s22 = sphi 0, %s26
      %p23 = scmp.ge.s32.totalorder %s22, 4
      %s32 = sphi 0, %s34
      %s35 = sphi 0, %s32
      %s36 = sphi 0, %s35
      %s52 = sphi 0, %s36
      %s56 = sphi 0, %s56
      %s58 = sphi 0, %s56
      %s59 = sphi 0, %s58
      %s73 = sphi 0, %s59
      %s77 = sphi 0, %s77
      %s79 = sphi 0, %s77
      %s80 = sphi 0, %s79
      %s94 = sphi 0, %s80
      %s98 = sphi 0, %s98
      %s100 = sphi 0, %s98
      %s101 = sphi 0, %s100
      %s115 = sphi 0, %s101
      %s119 = sphi 0, %s119
      %s121 = sphi 0, %s119
      %s122 = sphi 0, %s121
      %s136 = sphi 0, %s122
      %s140 = sphi 0, %s140
      %s142 = sphi 0, %s140
      %s143 = sphi 0, %s142
      %s157 = sphi 0, %s143
      %s161 = sphi 0, %s161
      %s163 = sphi 0, %s161
      %s164 = sphi 0, %s163
      %s178 = sphi 0, %s164
      %s184 = sphi 0, %s186
      %s187 = sphi 0, %s184
      %s188 = sphi 0, %s187
      %s204 = sphi 0, %s188
    $region4: #{tpu_custom_call.1} parent=1 // loop_header_branch
      %25 = sbr.rel (%p23) target = $region8
    $region5: #{tpu_custom_call.1} parent=1 // loop_body
      %s27 = ssub.s32 %s22, 1
      %s28 = ssub.s32 %s22, 2
      %s29 = sadd.s32 %s22, 1
      %s30 = ssub.s32 %s22, %s29
      %p31 = scmp.eq.s32.totalorder %s30, 0
      %s33 = sadd.s32 %s32, 1
      %s34 = scalar_select %p31, %s32, %s33
      %p37 = pneg %p31
      %p38 = scmp.eq.s32.totalorder %s22, 1
      %p39 = por %p37, %p38
      %p40 = scmp.ne.s32.totalorder %s32, %s35
      %p41 = scmp.eq.s32.totalorder %s22, 0
      %p42 = por %p40, %p41
      %p43 = scmp.ne.s32.totalorder %s32, %s35
      %p44 = scmp.eq.s32.totalorder %s27, 1
      %p45 = por %p43, %p44
      %p46 = scmp.ne.s32.totalorder %s35, %s36
      %p47 = scmp.eq.s32.totalorder %s27, 0
      %p48 = por %p46, %p47
      %p49 = scmp.ne.s32.totalorder %s35, %s36
      %p50 = scmp.eq.s32.totalorder %s28, 1
      %p51 = por %p49, %p50
      %p53 = scmp.ne.s32.totalorder %s36, %s52
      %p54 = scmp.eq.s32.totalorder %s28, 0
      %p55 = por %p53, %p54
      %s57 = sadd.s32 %s56, 1
      %p60 = scmp.eq.s32.totalorder %s22, 1
      %p61 = scmp.ne.s32.totalorder %s56, %s58
      %p62 = scmp.eq.s32.totalorder %s22, 0
      %p63 = por %p61, %p62
      %p64 = scmp.ne.s32.totalorder %s56, %s58
      %p65 = scmp.eq.s32.totalorder %s27, 1
      %p66 = por %p64, %p65
      %p67 = scmp.ne.s32.totalorder %s58, %s59
      %p68 = scmp.eq.s32.totalorder %s27, 0
      %p69 = por %p67, %p68
      %p70 = scmp.ne.s32.totalorder %s58, %s59
      %p71 = scmp.eq.s32.totalorder %s28, 1
      %p72 = por %p70, %p71
      %p74 = scmp.ne.s32.totalorder %s59, %s73
      %p75 = scmp.eq.s32.totalorder %s28, 0
      %p76 = por %p74, %p75
      %s78 = sadd.s32 %s77, 1
      %p81 = scmp.eq.s32.totalorder %s22, 1
      %p82 = scmp.ne.s32.totalorder %s77, %s79
      %p83 = scmp.eq.s32.totalorder %s22, 0
      %p84 = por %p82, %p83
      %p85 = scmp.ne.s32.totalorder %s77, %s79
      %p86 = scmp.eq.s32.totalorder %s27, 1
      %p87 = por %p85, %p86
      %p88 = scmp.ne.s32.totalorder %s79, %s80
      %p89 = scmp.eq.s32.totalorder %s27, 0
      %p90 = por %p88, %p89
      %p91 = scmp.ne.s32.totalorder %s79, %s80
      %p92 = scmp.eq.s32.totalorder %s28, 1
      %p93 = por %p91, %p92
      %p95 = scmp.ne.s32.totalorder %s80, %s94
      %p96 = scmp.eq.s32.totalorder %s28, 0
      %p97 = por %p95, %p96
      %s99 = sadd.s32 %s98, 1
      %p102 = scmp.eq.s32.totalorder %s22, 1
      %p103 = scmp.ne.s32.totalorder %s98, %s100
      %p104 = scmp.eq.s32.totalorder %s22, 0
      %p105 = por %p103, %p104
      %p106 = scmp.ne.s32.totalorder %s98, %s100
      %p107 = scmp.eq.s32.totalorder %s27, 1
      %p108 = por %p106, %p107
      %p109 = scmp.ne.s32.totalorder %s100, %s101
      %p110 = scmp.eq.s32.totalorder %s27, 0
      %p111 = por %p109, %p110
      %p112 = scmp.ne.s32.totalorder %s100, %s101
      %p113 = scmp.eq.s32.totalorder %s28, 1
      %p114 = por %p112, %p113
      %p116 = scmp.ne.s32.totalorder %s101, %s115
      %p117 = scmp.eq.s32.totalorder %s28, 0
      %p118 = por %p116, %p117
      %s120 = sadd.s32 %s119, 1
      %p123 = scmp.eq.s32.totalorder %s22, 1
      %p124 = scmp.ne.s32.totalorder %s119, %s121
      %p125 = scmp.eq.s32.totalorder %s22, 0
      %p126 = por %p124, %p125
      %p127 = scmp.ne.s32.totalorder %s119, %s121
      %p128 = scmp.eq.s32.totalorder %s27, 1
      %p129 = por %p127, %p128
      %p130 = scmp.ne.s32.totalorder %s121, %s122
      %p131 = scmp.eq.s32.totalorder %s27, 0
      %p132 = por %p130, %p131
      %p133 = scmp.ne.s32.totalorder %s121, %s122
      %p134 = scmp.eq.s32.totalorder %s28, 1
      %p135 = por %p133, %p134
      %p137 = scmp.ne.s32.totalorder %s122, %s136
      %p138 = scmp.eq.s32.totalorder %s28, 0
      %p139 = por %p137, %p138
      %s141 = sadd.s32 %s140, 1
      %p144 = scmp.eq.s32.totalorder %s22, 1
      %p145 = scmp.ne.s32.totalorder %s140, %s142
      %p146 = scmp.eq.s32.totalorder %s22, 0
      %p147 = por %p145, %p146
      %p148 = scmp.ne.s32.totalorder %s140, %s142
      %p149 = scmp.eq.s32.totalorder %s27, 1
      %p150 = por %p148, %p149
      %p151 = scmp.ne.s32.totalorder %s142, %s143
      %p152 = scmp.eq.s32.totalorder %s27, 0
      %p153 = por %p151, %p152
      %p154 = scmp.ne.s32.totalorder %s142, %s143
      %p155 = scmp.eq.s32.totalorder %s28, 1
      %p156 = por %p154, %p155
      %p158 = scmp.ne.s32.totalorder %s143, %s157
      %p159 = scmp.eq.s32.totalorder %s28, 0
      %p160 = por %p158, %p159
      %s162 = sadd.s32 %s161, 1
      %p165 = scmp.eq.s32.totalorder %s22, 1
      %p166 = scmp.ne.s32.totalorder %s161, %s163
      %p167 = scmp.eq.s32.totalorder %s22, 0
      %p168 = por %p166, %p167
      %p169 = scmp.ne.s32.totalorder %s161, %s163
      %p170 = scmp.eq.s32.totalorder %s27, 1
      %p171 = por %p169, %p170
      %p172 = scmp.ne.s32.totalorder %s163, %s164
      %p173 = scmp.eq.s32.totalorder %s27, 0
      %p174 = por %p172, %p173
      %p175 = scmp.ne.s32.totalorder %s163, %s164
      %p176 = scmp.eq.s32.totalorder %s28, 1
      %p177 = por %p175, %p176
      %p179 = scmp.ne.s32.totalorder %s164, %s178
      %p180 = scmp.eq.s32.totalorder %s28, 0
      %p181 = por %p179, %p180
      %s182 = ssub.s32 %s22, %s29
      %p183 = scmp.eq.s32.totalorder %s182, 0
      %s185 = sadd.s32 %s184, 1
      %s186 = scalar_select %p183, %s184, %s185
      %p189 = pneg %p183
      %p190 = scmp.eq.s32.totalorder %s22, 1
      %p191 = por %p189, %p190
      %p192 = scmp.ne.s32.totalorder %s184, %s187
      %p193 = scmp.eq.s32.totalorder %s22, 0
      %p194 = por %p192, %p193
      %p195 = scmp.ne.s32.totalorder %s184, %s187
      %p196 = scmp.eq.s32.totalorder %s27, 1
      %p197 = por %p195, %p196
      %p198 = scmp.ne.s32.totalorder %s187, %s188
      %p199 = scmp.eq.s32.totalorder %s27, 0
      %p200 = por %p198, %p199
      %p201 = scmp.ne.s32.totalorder %s187, %s188
      %p202 = scmp.eq.s32.totalorder %s28, 1
      %p203 = por %p201, %p202
      %p205 = scmp.ne.s32.totalorder %s188, %s204
      %p206 = scmp.eq.s32.totalorder %s28, 0
      %p207 = por %p205, %p206
      %p208 = scmp.le.s32.totalorder 1, %s22
      %p209 = scmp.lt.s32.totalorder %s22, 3
      %p210 = pnand %p208, %p209
      %p211 = pneg %p210
      // Predicated region
      $region9: #{tpu_custom_call.1} parent=5 // pred_check
        _
      $region10: #{tpu_custom_call.1} parent=5 // pred_check_branch
        %213 = sbr.rel (%p210) target = $region12
      $region11: #{tpu_custom_call.1} parent=5 // pred_region
        %s214 = ssub.s32 %s22, 1
        // Predicated region
        $region13: #{tpu_custom_call.1} parent=11 // pred_check
          %p215 = pneg %p69
        $region14: #{tpu_custom_call.1} parent=11 // pred_check_branch
          %217 = sbr.rel (%p215) target = $region16
        $region15: #{tpu_custom_call.1} parent=11 // pred_region
          %219 = vsyncadd [#allocation6], 0
          %s220 = sshll.u32 %s1, 4
          %s221 = int_to_ptr.hbm [resolvable:$true] %s220
          %s222 = sshll.u32 [#allocation5], 4
          %s223 = int_to_ptr.vmem [resolvable:$true] %s222
          %228 = dma.hbm_to_vmem [thread:$0]  %s221, 12288, %s223, [#allocation6], 128, 128, 8
        $region16: #{tpu_custom_call.1} parent=11 // pred_fallthru
          _
        // Predicated region
        $region17: #{tpu_custom_call.1} parent=11 // pred_check
          %p229 = pneg %p90
        $region18: #{tpu_custom_call.1} parent=11 // pred_check_branch
          %231 = sbr.rel (%p229) target = $region20
        $region19: #{tpu_custom_call.1} parent=11 // pred_region
          _
        $region20: #{tpu_custom_call.1} parent=11 // pred_fallthru
          _
        // Predicated region
        $region21: #{tpu_custom_call.1} parent=11 // pred_check
          %p232 = pneg %p111
        $region22: #{tpu_custom_call.1} parent=11 // pred_check_branch
          %234 = sbr.rel (%p232) target = $region24
        $region23: #{tpu_custom_call.1} parent=11 // pred_region
          %236 = vsyncadd [#allocation6], 0
          %s237 = sshll.u32 %s3, 4
          %s238 = int_to_ptr.hbm [resolvable:$true] %s237
          %s239 = sshll.u32 [#allocation7], 4
          %s240 = int_to_ptr.vmem [resolvable:$true] %s239
          %245 = dma.hbm_to_vmem [thread:$0]  %s238, 12288, %s240, [#allocation6], 768, 768, 48
        $region24: #{tpu_custom_call.1} parent=11 // pred_fallthru
          _
        // Predicated region
        $region25: #{tpu_custom_call.1} parent=11 // pred_check
          %p246 = pneg %p132
        $region26: #{tpu_custom_call.1} parent=11 // pred_check_branch
          %248 = sbr.rel (%p246) target = $region28
        $region27: #{tpu_custom_call.1} parent=11 // pred_region
          %250 = vsyncadd [#allocation9], 0
          %s252 = sshll.u32 %s4, 4
          %s253 = int_to_ptr.hbm [resolvable:$true] %s252
          %s254 = sshll.u32 [#allocation8], 4
          %s255 = int_to_ptr.vmem [resolvable:$true] %s254
          %257 = dma.hbm_to_vmem [thread:$0]  %s253, 96, %s255, [#allocation9]
        $region28: #{tpu_custom_call.1} parent=11 // pred_fallthru
          _
        // Predicated region
        $region29: #{tpu_custom_call.1} parent=11 // pred_check
          %p258 = pneg %p153
        $region30: #{tpu_custom_call.1} parent=11 // pred_check_branch
          %260 = sbr.rel (%p258) target = $region32
        $region31: #{tpu_custom_call.1} parent=11 // pred_region
          %262 = vsyncadd [#allocation9], 0
          %s264 = sshll.u32 %s5, 4
          %s265 = int_to_ptr.hbm [resolvable:$true] %s264
          %s266 = sshll.u32 [#allocation10], 4
          %s267 = int_to_ptr.vmem [resolvable:$true] %s266
          %269 = dma.hbm_to_vmem [thread:$0]  %s265, 96, %s267, [#allocation9]
        $region32: #{tpu_custom_call.1} parent=11 // pred_fallthru
          _
        // Predicated region
        $region33: #{tpu_custom_call.1} parent=11 // pred_check
          %p270 = pneg %p174
        $region34: #{tpu_custom_call.1} parent=11 // pred_check_branch
          %272 = sbr.rel (%p270) target = $region36
        $region35: #{tpu_custom_call.1} parent=11 // pred_region
          %274 = vsyncadd [#allocation12], 0
          %s276 = sshll.u32 %s6, 4
          %s277 = int_to_ptr.hbm [resolvable:$true] %s276
          %s278 = sshll.u32 [#allocation11], 4
          %s279 = int_to_ptr.vmem [resolvable:$true] %s278
          %281 = dma.hbm_to_vmem [thread:$0]  %s277, 96, %s279, [#allocation12]
        $region36: #{tpu_custom_call.1} parent=11 // pred_fallthru
          _
      $region12: #{tpu_custom_call.1} parent=5 // pred_fallthru
        _
      %p282 = scmp.lt.s32.totalorder %s22, 2
      // Predicated region
      $region37: #{tpu_custom_call.1} parent=5 // pred_check
        %p283 = pneg %p282
      $region38: #{tpu_custom_call.1} parent=5 // pred_check_branch
        %285 = sbr.rel (%p283) target = $region40
      $region39: #{tpu_custom_call.1} parent=5 // pred_region
        // Predicated region
        $region41: #{tpu_custom_call.1} parent=39 // pred_check
          %p286 = pneg %p42
        $region42: #{tpu_custom_call.1} parent=39 // pred_check_branch
          %288 = sbr.rel (%p286) target = $region44
        $region43: #{tpu_custom_call.1} parent=39 // pred_region
          %s289 = sand.u32 %s32, 1
          %s290 = scalar_lea.sflag [#allocation3], %s289
          %s291 = sand.u32 %s32, 1
          %s292 = smul.addr %s291, 48
          %s293 = scalar_lea.vmem [#allocation2], %s292
          %295 = vsyncadd %s290, 0
          %s296 = smul.addr %s22, 6
          %s297 = smul.addr %s296, 8
          %s298 = scalar_lea.hbm %s0, %s297
          %s300 = sshll.u32 %s298, 4
          %s301 = int_to_ptr.hbm [resolvable:$true] %s300
          %s302 = sshll.u32 %s293, 4
          %s303 = int_to_ptr.vmem [resolvable:$true] %s302
          %305 = dma.hbm_to_vmem [thread:$0]  %s301, 768, %s303, %s290
        $region44: #{tpu_custom_call.1} parent=39 // pred_fallthru
          _
      $region40: #{tpu_custom_call.1} parent=5 // pred_fallthru
        _
      %p306 = scmp.le.s32.totalorder 1, %s22
      %p307 = scmp.lt.s32.totalorder %s22, 3
      %p308 = pnand %p306, %p307
      %p309 = pneg %p308
      // Predicated region
      $region45: #{tpu_custom_call.1} parent=5 // pred_check
        _
      $region46: #{tpu_custom_call.1} parent=5 // pred_check_branch
        %311 = sbr.rel (%p308) target = $region48
      $region47: #{tpu_custom_call.1} parent=5 // pred_region
        %s312 = ssub.s32 %s22, 1
        %s313 = sand.u32 %s35, 1
        %s314 = scalar_lea.sflag [#allocation3], %s313
        %s315 = sand.u32 %s35, 1
        %s316 = smul.addr %s315, 48
        %s317 = scalar_lea.vmem [#allocation2], %s316
        // Predicated region
        $region49: #{tpu_custom_call.1} parent=47 // pred_check
          %p318 = pneg %p48
        $region50: #{tpu_custom_call.1} parent=47 // pred_check_branch
          %320 = sbr.rel (%p318) target = $region52
        $region51: #{tpu_custom_call.1} parent=47 // pred_region
          %322 = dma.done %s314, 768
        $region52: #{tpu_custom_call.1} parent=47 // pred_fallthru
          _
        // Predicated region
        $region53: #{tpu_custom_call.1} parent=47 // pred_check
          %p323 = pneg %p69
        $region54: #{tpu_custom_call.1} parent=47 // pred_check_branch
          %325 = sbr.rel (%p323) target = $region56
        $region55: #{tpu_custom_call.1} parent=47 // pred_region
          %327 = dma.done [#allocation6], 12288
        $region56: #{tpu_custom_call.1} parent=47 // pred_fallthru
          _
        // Predicated region
        $region57: #{tpu_custom_call.1} parent=47 // pred_check
          %p328 = pneg %p111
        $region58: #{tpu_custom_call.1} parent=47 // pred_check_branch
          %330 = sbr.rel (%p328) target = $region60
        $region59: #{tpu_custom_call.1} parent=47 // pred_region
          %332 = dma.done [#allocation6], 12288
        $region60: #{tpu_custom_call.1} parent=47 // pred_fallthru
          _
        // Predicated region
        $region61: #{tpu_custom_call.1} parent=47 // pred_check
          %p333 = pneg %p132
        $region62: #{tpu_custom_call.1} parent=47 // pred_check_branch
          %335 = sbr.rel (%p333) target = $region64
        $region63: #{tpu_custom_call.1} parent=47 // pred_region
          %337 = dma.done [#allocation9], 96
        $region64: #{tpu_custom_call.1} parent=47 // pred_fallthru
          _
        // Predicated region
        $region65: #{tpu_custom_call.1} parent=47 // pred_check
          %p338 = pneg %p153
        $region66: #{tpu_custom_call.1} parent=47 // pred_check_branch
          %340 = sbr.rel (%p338) target = $region68
        $region67: #{tpu_custom_call.1} parent=47 // pred_region
          %342 = dma.done [#allocation9], 96
        $region68: #{tpu_custom_call.1} parent=47 // pred_fallthru
          _
        // Predicated region
        $region69: #{tpu_custom_call.1} parent=47 // pred_check
          %p343 = pneg %p174
        $region70: #{tpu_custom_call.1} parent=47 // pred_check_branch
          %345 = sbr.rel (%p343) target = $region72
        $region71: #{tpu_custom_call.1} parent=47 // pred_region
          %347 = dma.done [#allocation12], 96
        $region72: #{tpu_custom_call.1} parent=47 // pred_fallthru
          _
        %s348 = sand.u32 %s35, 1
        %s349 = scalar_lea.sflag [#allocation3], %s348
        %s350 = sand.u32 %s35, 1
        %s351 = smul.addr %s350, 48
        %s352 = scalar_lea.vmem [#allocation2], %s351
        %p353 = pneg %p48
        %p354 = pneg %p45
        %p355 = pneg %p69
        %p356 = pneg %p66
        %p357 = pneg %p90
        %p358 = pneg %p87
        %p359 = pneg %p111
        %p360 = pneg %p108
        %p361 = pneg %p132
        %p362 = pneg %p129
        %p363 = pneg %p153
        %p364 = pneg %p150
        %p365 = pneg %p174
        %p366 = pneg %p171
        %p367 = pneg %p200
        %p368 = pneg %p197
        %s369 = sand.u32 %s187, 1
        %s370 = scalar_lea.sflag [#allocation4], %s369
        %s371 = sand.u32 %s187, 1
        %s372 = smul.addr %s371, 48
        %s373 = scalar_lea.vmem [#allocation13], %s372
        %v374 = vld [vmem:[%s317] sm:$0xff]
        %v375 = vld [vmem:[%s317 + $0x8] sm:$0xff]
        %v376 = vld [vmem:[%s317 + $0x10] sm:$0xff]
        %v377 = vld [vmem:[%s317 + $0x18] sm:$0xff]
        %v378 = vld [vmem:[%s317 + $0x20] sm:$0xff]
        %v379 = vld [vmem:[%s317 + $0x28] sm:$0xff]
        %v380 = vld [vmem:[#allocation5] sm:$0xff]
        %v381 = vld [vmem:[#allocation5 + $0x8] sm:$0xff]
        %v382 = vld [vmem:[#allocation5 + $0x10] sm:$0xff]
        %v383 = vld [vmem:[#allocation5 + $0x18] sm:$0xff]
        %v384 = vld [vmem:[#allocation5 + $0x20] sm:$0xff]
        %v385 = vld [vmem:[#allocation5 + $0x28] sm:$0xff]
        %v386 = vld [vmem:[#allocation5 + $0x30] sm:$0xff]
        %v387 = vld [vmem:[#allocation5 + $0x38] sm:$0xff]
        %v388 = vld [vmem:[#allocation5 + $0x40] sm:$0xff]
        %v389 = vld [vmem:[#allocation5 + $0x48] sm:$0xff]
        %v390 = vld [vmem:[#allocation5 + $0x50] sm:$0xff]
        %v391 = vld [vmem:[#allocation5 + $0x58] sm:$0xff]
        %v392 = vld [vmem:[#allocation5 + $0x60] sm:$0xff]
        %v393 = vld [vmem:[#allocation5 + $0x68] sm:$0xff]
        %v394 = vld [vmem:[#allocation5 + $0x70] sm:$0xff]
        %v395 = vld [vmem:[#allocation5 + $0x78] sm:$0xff]
        %v396 = vld [vmem:[#allocation5 + $0x80] sm:$0xff]
        %v397 = vld [vmem:[#allocation5 + $0x88] sm:$0xff]
        %v398 = vld [vmem:[#allocation5 + $0x90] sm:$0xff]
        %v399 = vld [vmem:[#allocation5 + $0x98] sm:$0xff]
        %v400 = vld [vmem:[#allocation5 + $0xa0] sm:$0xff]
        %v401 = vld [vmem:[#allocation5 + $0xa8] sm:$0xff]
        %v402 = vld [vmem:[#allocation5 + $0xb0] sm:$0xff]
        %v403 = vld [vmem:[#allocation5 + $0xb8] sm:$0xff]
        %v404 = vld [vmem:[#allocation5 + $0xc0] sm:$0xff]
        %v405 = vld [vmem:[#allocation5 + $0xc8] sm:$0xff]
        %v406 = vld [vmem:[#allocation5 + $0xd0] sm:$0xff]
        %v407 = vld [vmem:[#allocation5 + $0xd8] sm:$0xff]
        %v408 = vld [vmem:[#allocation5 + $0xe0] sm:$0xff]
        %v409 = vld [vmem:[#allocation5 + $0xe8] sm:$0xff]
        %v410 = vld [vmem:[#allocation5 + $0xf0] sm:$0xff]
        %v411 = vld [vmem:[#allocation5 + $0xf8] sm:$0xff]
        %v412 = vld [vmem:[#allocation5 + $0x100] sm:$0xff]
        %v413 = vld [vmem:[#allocation5 + $0x108] sm:$0xff]
        %v414 = vld [vmem:[#allocation5 + $0x110] sm:$0xff]
        %v415 = vld [vmem:[#allocation5 + $0x118] sm:$0xff]
        %v416 = vld [vmem:[#allocation5 + $0x120] sm:$0xff]
        %v417 = vld [vmem:[#allocation5 + $0x128] sm:$0xff]
        %v418 = vld [vmem:[#allocation5 + $0x130] sm:$0xff]
        %v419 = vld [vmem:[#allocation5 + $0x138] sm:$0xff]
        %v420 = vld [vmem:[#allocation5 + $0x140] sm:$0xff]
        %v421 = vld [vmem:[#allocation5 + $0x148] sm:$0xff]
        %v422 = vld [vmem:[#allocation5 + $0x150] sm:$0xff]
        %v423 = vld [vmem:[#allocation5 + $0x158] sm:$0xff]
        %v424 = vld [vmem:[#allocation5 + $0x160] sm:$0xff]
        %v425 = vld [vmem:[#allocation5 + $0x168] sm:$0xff]
        %v426 = vld [vmem:[#allocation5 + $0x170] sm:$0xff]
        %v427 = vld [vmem:[#allocation5 + $0x178] sm:$0xff]
        %v428 = vld [vmem:[#allocation5 + $0x180] sm:$0xff]
        %v429 = vld [vmem:[#allocation5 + $0x188] sm:$0xff]
        %v430 = vld [vmem:[#allocation5 + $0x190] sm:$0xff]
        %v431 = vld [vmem:[#allocation5 + $0x198] sm:$0xff]
        %v432 = vld [vmem:[#allocation5 + $0x1a0] sm:$0xff]
        %v433 = vld [vmem:[#allocation5 + $0x1a8] sm:$0xff]
        %v434 = vld [vmem:[#allocation5 + $0x1b0] sm:$0xff]
        %v435 = vld [vmem:[#allocation5 + $0x1b8] sm:$0xff]
        %v436 = vld [vmem:[#allocation5 + $0x1c0] sm:$0xff]
        %v437 = vld [vmem:[#allocation5 + $0x1c8] sm:$0xff]
        %v438 = vld [vmem:[#allocation5 + $0x1d0] sm:$0xff]
        %v439 = vld [vmem:[#allocation5 + $0x1d8] sm:$0xff]
        %v440 = vld [vmem:[#allocation5 + $0x1e0] sm:$0xff]
        %v441 = vld [vmem:[#allocation5 + $0x1e8] sm:$0xff]
        %v442 = vld [vmem:[#allocation5 + $0x1f0] sm:$0xff]
        %v443 = vld [vmem:[#allocation5 + $0x1f8] sm:$0xff]
        %v444 = vld [vmem:[#allocation5 + $0x200] sm:$0xff]
        %v445 = vld [vmem:[#allocation5 + $0x208] sm:$0xff]
        %v446 = vld [vmem:[#allocation5 + $0x210] sm:$0xff]
        %v447 = vld [vmem:[#allocation5 + $0x218] sm:$0xff]
        %v448 = vld [vmem:[#allocation5 + $0x220] sm:$0xff]
        %v449 = vld [vmem:[#allocation5 + $0x228] sm:$0xff]
        %v450 = vld [vmem:[#allocation5 + $0x230] sm:$0xff]
        %v451 = vld [vmem:[#allocation5 + $0x238] sm:$0xff]
        %v452 = vld [vmem:[#allocation5 + $0x240] sm:$0xff]
        %v453 = vld [vmem:[#allocation5 + $0x248] sm:$0xff]
        %v454 = vld [vmem:[#allocation5 + $0x250] sm:$0xff]
        %v455 = vld [vmem:[#allocation5 + $0x258] sm:$0xff]
        %v456 = vld [vmem:[#allocation5 + $0x260] sm:$0xff]
        %v457 = vld [vmem:[#allocation5 + $0x268] sm:$0xff]
        %v458 = vld [vmem:[#allocation5 + $0x270] sm:$0xff]
        %v459 = vld [vmem:[#allocation5 + $0x278] sm:$0xff]
        %v460 = vld [vmem:[#allocation5 + $0x280] sm:$0xff]
        %v461 = vld [vmem:[#allocation5 + $0x288] sm:$0xff]
        %v462 = vld [vmem:[#allocation5 + $0x290] sm:$0xff]
        %v463 = vld [vmem:[#allocation5 + $0x298] sm:$0xff]
        %v464 = vld [vmem:[#allocation5 + $0x2a0] sm:$0xff]
        %v465 = vld [vmem:[#allocation5 + $0x2a8] sm:$0xff]
        %v466 = vld [vmem:[#allocation5 + $0x2b0] sm:$0xff]
        %v467 = vld [vmem:[#allocation5 + $0x2b8] sm:$0xff]
        %v468 = vld [vmem:[#allocation5 + $0x2c0] sm:$0xff]
        %v469 = vld [vmem:[#allocation5 + $0x2c8] sm:$0xff]
        %v470 = vld [vmem:[#allocation5 + $0x2d0] sm:$0xff]
        %v471 = vld [vmem:[#allocation5 + $0x2d8] sm:$0xff]
        %v472 = vld [vmem:[#allocation5 + $0x2e0] sm:$0xff]
        %v473 = vld [vmem:[#allocation5 + $0x2e8] sm:$0xff]
        %v474 = vld [vmem:[#allocation5 + $0x2f0] sm:$0xff]
        %v475 = vld [vmem:[#allocation5 + $0x2f8] sm:$0xff]
        %v476 = vld [vmem:[%s2] sm:$0x1]
        %v478 = vperm.slane %v476, 0
        %480 = vmatpush.msra.mxu0 %v395
        %481 = vmatpush.msra.mxu0 %v394
        %482 = vmatpush.msra.mxu0 %v393
        %483 = vmatpush.msra.mxu0 %v392
        %484 = vmatpush.msra.mxu0 %v391
        %485 = vmatpush.msra.mxu0 %v390
        %486 = vmatpush.msra.mxu0 %v389
        %487 = vmatpush.msra.mxu0 %v388
        %488 = vmatpush.msra.mxu0 %v387
        %489 = vmatpush.msra.mxu0 %v386
        %490 = vmatpush.msra.mxu0 %v385
        %491 = vmatpush.msra.mxu0 %v384
        %492 = vmatpush.msra.mxu0 %v383
        %493 = vmatpush.msra.mxu0 %v382
        %494 = vmatpush.msra.mxu0 %v381
        %495 = vmatpush.msra.mxu0 %v380
        %496 = vmatmul.f32.gmra.mxu0 %v374
        %v497 = vpop.f32.mrf.mxu0
        %v498 = vadd.f32 %v478, %v497
        %499 = vdwg.mxu0
        %500 = vmatpush.msra.mxu0 %v411
        %501 = vmatpush.msra.mxu0 %v410
        %502 = vmatpush.msra.mxu0 %v409
        %503 = vmatpush.msra.mxu0 %v408
        %504 = vmatpush.msra.mxu0 %v407
        %505 = vmatpush.msra.mxu0 %v406
        %506 = vmatpush.msra.mxu0 %v405
        %507 = vmatpush.msra.mxu0 %v404
        %508 = vmatpush.msra.mxu0 %v403
        %509 = vmatpush.msra.mxu0 %v402
        %510 = vmatpush.msra.mxu0 %v401
        %511 = vmatpush.msra.mxu0 %v400
        %512 = vmatpush.msra.mxu0 %v399
        %513 = vmatpush.msra.mxu0 %v398
        %514 = vmatpush.msra.mxu0 %v397
        %515 = vmatpush.msra.mxu0 %v396
        %516 = vmatmul.f32.gmra.mxu0 %v375
        %v517 = vpop.f32.mrf.mxu0
        %v518 = vadd.f32 %v498, %v517
        %519 = vdwg.mxu0
        %520 = vmatpush.msra.mxu0 %v427
        %521 = vmatpush.msra.mxu0 %v426
        %522 = vmatpush.msra.mxu0 %v425
        %523 = vmatpush.msra.mxu0 %v424
        %524 = vmatpush.msra.mxu0 %v423
        %525 = vmatpush.msra.mxu0 %v422
        %526 = vmatpush.msra.mxu0 %v421
        %527 = vmatpush.msra.mxu0 %v420
        %528 = vmatpush.msra.mxu0 %v419
        %529 = vmatpush.msra.mxu0 %v418
        %530 = vmatpush.msra.mxu0 %v417
        %531 = vmatpush.msra.mxu0 %v416
        %532 = vmatpush.msra.mxu0 %v415
        %533 = vmatpush.msra.mxu0 %v414
        %534 = vmatpush.msra.mxu0 %v413
        %535 = vmatpush.msra.mxu0 %v412
        %536 = vmatmul.f32.gmra.mxu0 %v376
        %v537 = vpop.f32.mrf.mxu0
        %v538 = vadd.f32 %v518, %v537
        %539 = vdwg.mxu0
        %540 = vmatpush.msra.mxu0 %v443
        %541 = vmatpush.msra.mxu0 %v442
        %542 = vmatpush.msra.mxu0 %v441
        %543 = vmatpush.msra.mxu0 %v440
        %544 = vmatpush.msra.mxu0 %v439
        %545 = vmatpush.msra.mxu0 %v438
        %546 = vmatpush.msra.mxu0 %v437
        %547 = vmatpush.msra.mxu0 %v436
        %548 = vmatpush.msra.mxu0 %v435
        %549 = vmatpush.msra.mxu0 %v434
        %550 = vmatpush.msra.mxu0 %v433
        %551 = vmatpush.msra.mxu0 %v432
        %552 = vmatpush.msra.mxu0 %v431
        %553 = vmatpush.msra.mxu0 %v430
        %554 = vmatpush.msra.mxu0 %v429
        %555 = vmatpush.msra.mxu0 %v428
        %556 = vmatmul.f32.gmra.mxu0 %v377
        %v557 = vpop.f32.mrf.mxu0
        %v558 = vadd.f32 %v538, %v557
        %559 = vdwg.mxu0
        %560 = vmatpush.msra.mxu0 %v459
        %561 = vmatpush.msra.mxu0 %v458
        %562 = vmatpush.msra.mxu0 %v457
        %563 = vmatpush.msra.mxu0 %v456
        %564 = vmatpush.msra.mxu0 %v455
        %565 = vmatpush.msra.mxu0 %v454
        %566 = vmatpush.msra.mxu0 %v453
        %567 = vmatpush.msra.mxu0 %v452
        %568 = vmatpush.msra.mxu0 %v451
        %569 = vmatpush.msra.mxu0 %v450
        %570 = vmatpush.msra.mxu0 %v449
        %571 = vmatpush.msra.mxu0 %v448
        %572 = vmatpush.msra.mxu0 %v447
        %573 = vmatpush.msra.mxu0 %v446
        %574 = vmatpush.msra.mxu0 %v445
        %575 = vmatpush.msra.mxu0 %v444
        %576 = vmatmul.f32.gmra.mxu0 %v378
        %v577 = vpop.f32.mrf.mxu0
        %v578 = vadd.f32 %v558, %v577
        %579 = vdwg.mxu0
        %580 = vmatpush.msra.mxu0 %v475
        %581 = vmatpush.msra.mxu0 %v474
        %582 = vmatpush.msra.mxu0 %v473
        %583 = vmatpush.msra.mxu0 %v472
        %584 = vmatpush.msra.mxu0 %v471
        %585 = vmatpush.msra.mxu0 %v470
        %586 = vmatpush.msra.mxu0 %v469
        %587 = vmatpush.msra.mxu0 %v468
        %588 = vmatpush.msra.mxu0 %v467
        %589 = vmatpush.msra.mxu0 %v466
        %590 = vmatpush.msra.mxu0 %v465
        %591 = vmatpush.msra.mxu0 %v464
        %592 = vmatpush.msra.mxu0 %v463
        %593 = vmatpush.msra.mxu0 %v462
        %594 = vmatpush.msra.mxu0 %v461
        %595 = vmatpush.msra.mxu0 %v460
        %596 = vmatmul.f32.gmra.mxu0 %v379
        %v597 = vpop.f32.mrf.mxu0
        %v598 = vadd.f32 %v578, %v597
        %599 = vdwg.mxu0
        %v600 = vmax.f32 %v598, 0.0
        %v601 = vld [vmem:[#allocation7] sm:$0xff]
        %v602 = vld [vmem:[#allocation7 + $0x8] sm:$0xff]
        %v603 = vld [vmem:[#allocation7 + $0x10] sm:$0xff]
        %v604 = vld [vmem:[#allocation7 + $0x18] sm:$0xff]
        %v605 = vld [vmem:[#allocation7 + $0x20] sm:$0xff]
        %v606 = vld [vmem:[#allocation7 + $0x28] sm:$0xff]
        %v607 = vld [vmem:[#allocation7 + $0x30] sm:$0xff]
        %v608 = vld [vmem:[#allocation7 + $0x38] sm:$0xff]
        %v609 = vld [vmem:[#allocation7 + $0x40] sm:$0xff]
        %v610 = vld [vmem:[#allocation7 + $0x48] sm:$0xff]
        %v611 = vld [vmem:[#allocation7 + $0x50] sm:$0xff]
        %v612 = vld [vmem:[#allocation7 + $0x58] sm:$0xff]
        %v613 = vld [vmem:[#allocation7 + $0x60] sm:$0xff]
        %v614 = vld [vmem:[#allocation7 + $0x68] sm:$0xff]
        %v615 = vld [vmem:[#allocation7 + $0x70] sm:$0xff]
        %v616 = vld [vmem:[#allocation7 + $0x78] sm:$0xff]
        %v617 = vld [vmem:[#allocation7 + $0x80] sm:$0xff]
        %v618 = vld [vmem:[#allocation7 + $0x88] sm:$0xff]
        %v619 = vld [vmem:[#allocation7 + $0x90] sm:$0xff]
        %v620 = vld [vmem:[#allocation7 + $0x98] sm:$0xff]
        %v621 = vld [vmem:[#allocation7 + $0xa0] sm:$0xff]
        %v622 = vld [vmem:[#allocation7 + $0xa8] sm:$0xff]
        %v623 = vld [vmem:[#allocation7 + $0xb0] sm:$0xff]
        %v624 = vld [vmem:[#allocation7 + $0xb8] sm:$0xff]
        %v625 = vld [vmem:[#allocation7 + $0xc0] sm:$0xff]
        %v626 = vld [vmem:[#allocation7 + $0xc8] sm:$0xff]
        %v627 = vld [vmem:[#allocation7 + $0xd0] sm:$0xff]
        %v628 = vld [vmem:[#allocation7 + $0xd8] sm:$0xff]
        %v629 = vld [vmem:[#allocation7 + $0xe0] sm:$0xff]
        %v630 = vld [vmem:[#allocation7 + $0xe8] sm:$0xff]
        %v631 = vld [vmem:[#allocation7 + $0xf0] sm:$0xff]
        %v632 = vld [vmem:[#allocation7 + $0xf8] sm:$0xff]
        %v633 = vld [vmem:[#allocation7 + $0x100] sm:$0xff]
        %v634 = vld [vmem:[#allocation7 + $0x108] sm:$0xff]
        %v635 = vld [vmem:[#allocation7 + $0x110] sm:$0xff]
        %v636 = vld [vmem:[#allocation7 + $0x118] sm:$0xff]
        %v637 = vld [vmem:[#allocation7 + $0x120] sm:$0xff]
        %v638 = vld [vmem:[#allocation7 + $0x128] sm:$0xff]
        %v639 = vld [vmem:[#allocation7 + $0x130] sm:$0xff]
        %v640 = vld [vmem:[#allocation7 + $0x138] sm:$0xff]
        %v641 = vld [vmem:[#allocation7 + $0x140] sm:$0xff]
        %v642 = vld [vmem:[#allocation7 + $0x148] sm:$0xff]
        %v643 = vld [vmem:[#allocation7 + $0x150] sm:$0xff]
        %v644 = vld [vmem:[#allocation7 + $0x158] sm:$0xff]
        %v645 = vld [vmem:[#allocation7 + $0x160] sm:$0xff]
        %v646 = vld [vmem:[#allocation7 + $0x168] sm:$0xff]
        %v647 = vld [vmem:[#allocation7 + $0x170] sm:$0xff]
        %v648 = vld [vmem:[#allocation7 + $0x178] sm:$0xff]
        %v649 = vld [vmem:[#allocation7 + $0x180] sm:$0xff]
        %v650 = vld [vmem:[#allocation7 + $0x188] sm:$0xff]
        %v651 = vld [vmem:[#allocation7 + $0x190] sm:$0xff]
        %v652 = vld [vmem:[#allocation7 + $0x198] sm:$0xff]
        %v653 = vld [vmem:[#allocation7 + $0x1a0] sm:$0xff]
        %v654 = vld [vmem:[#allocation7 + $0x1a8] sm:$0xff]
        %v655 = vld [vmem:[#allocation7 + $0x1b0] sm:$0xff]
        %v656 = vld [vmem:[#allocation7 + $0x1b8] sm:$0xff]
        %v657 = vld [vmem:[#allocation7 + $0x1c0] sm:$0xff]
        %v658 = vld [vmem:[#allocation7 + $0x1c8] sm:$0xff]
        %v659 = vld [vmem:[#allocation7 + $0x1d0] sm:$0xff]
        %v660 = vld [vmem:[#allocation7 + $0x1d8] sm:$0xff]
        %v661 = vld [vmem:[#allocation7 + $0x1e0] sm:$0xff]
        %v662 = vld [vmem:[#allocation7 + $0x1e8] sm:$0xff]
        %v663 = vld [vmem:[#allocation7 + $0x1f0] sm:$0xff]
        %v664 = vld [vmem:[#allocation7 + $0x1f8] sm:$0xff]
        %v665 = vld [vmem:[#allocation7 + $0x200] sm:$0xff]
        %v666 = vld [vmem:[#allocation7 + $0x208] sm:$0xff]
        %v667 = vld [vmem:[#allocation7 + $0x210] sm:$0xff]
        %v668 = vld [vmem:[#allocation7 + $0x218] sm:$0xff]
        %v669 = vld [vmem:[#allocation7 + $0x220] sm:$0xff]
        %v670 = vld [vmem:[#allocation7 + $0x228] sm:$0xff]
        %v671 = vld [vmem:[#allocation7 + $0x230] sm:$0xff]
        %v672 = vld [vmem:[#allocation7 + $0x238] sm:$0xff]
        %v673 = vld [vmem:[#allocation7 + $0x240] sm:$0xff]
        %v674 = vld [vmem:[#allocation7 + $0x248] sm:$0xff]
        %v675 = vld [vmem:[#allocation7 + $0x250] sm:$0xff]
        %v676 = vld [vmem:[#allocation7 + $0x258] sm:$0xff]
        %v677 = vld [vmem:[#allocation7 + $0x260] sm:$0xff]
        %v678 = vld [vmem:[#allocation7 + $0x268] sm:$0xff]
        %v679 = vld [vmem:[#allocation7 + $0x270] sm:$0xff]
        %v680 = vld [vmem:[#allocation7 + $0x278] sm:$0xff]
        %v681 = vld [vmem:[#allocation7 + $0x280] sm:$0xff]
        %v682 = vld [vmem:[#allocation7 + $0x288] sm:$0xff]
        %v683 = vld [vmem:[#allocation7 + $0x290] sm:$0xff]
        %v684 = vld [vmem:[#allocation7 + $0x298] sm:$0xff]
        %v685 = vld [vmem:[#allocation7 + $0x2a0] sm:$0xff]
        %v686 = vld [vmem:[#allocation7 + $0x2a8] sm:$0xff]
        %v687 = vld [vmem:[#allocation7 + $0x2b0] sm:$0xff]
        %v688 = vld [vmem:[#allocation7 + $0x2b8] sm:$0xff]
        %v689 = vld [vmem:[#allocation7 + $0x2c0] sm:$0xff]
        %v690 = vld [vmem:[#allocation7 + $0x2c8] sm:$0xff]
        %v691 = vld [vmem:[#allocation7 + $0x2d0] sm:$0xff]
        %v692 = vld [vmem:[#allocation7 + $0x2d8] sm:$0xff]
        %v693 = vld [vmem:[#allocation7 + $0x2e0] sm:$0xff]
        %v694 = vld [vmem:[#allocation7 + $0x2e8] sm:$0xff]
        %v695 = vld [vmem:[#allocation7 + $0x2f0] sm:$0xff]
        %v696 = vld [vmem:[#allocation7 + $0x2f8] sm:$0xff]
        %v697 = vld [vmem:[#allocation8] sm:$0x3f]
        %v699 = vperm.slane %v697, 0
        %v700 = vperm.slane %v697, 1
        %v701 = vperm.slane %v697, 2
        %v702 = vperm.slane %v697, 3
        %v703 = vperm.slane %v697, 4
        %v704 = vperm.slane %v697, 5
        %711 = vmatpush.msra.mxu0 %v691
        %712 = vmatpush.msra.mxu0 %v685
        %713 = vmatpush.msra.mxu0 %v679
        %714 = vmatpush.msra.mxu0 %v673
        %715 = vmatpush.msra.mxu0 %v667
        %716 = vmatpush.msra.mxu0 %v661
        %717 = vmatpush.msra.mxu0 %v655
        %718 = vmatpush.msra.mxu0 %v649
        %719 = vmatpush.msra.mxu0 %v643
        %720 = vmatpush.msra.mxu0 %v637
        %721 = vmatpush.msra.mxu0 %v631
        %722 = vmatpush.msra.mxu0 %v625
        %723 = vmatpush.msra.mxu0 %v619
        %724 = vmatpush.msra.mxu0 %v613
        %725 = vmatpush.msra.mxu0 %v607
        %726 = vmatpush.msra.mxu0 %v601
        %727 = vmatmul.f32.gmra.mxu0 %v600
        %v728 = vpop.f32.mrf.mxu0
        %v729 = vadd.f32 %v699, %v728
        %730 = vdwg.mxu0
        %731 = vmatpush.msra.mxu0 %v692
        %732 = vmatpush.msra.mxu0 %v686
        %733 = vmatpush.msra.mxu0 %v680
        %734 = vmatpush.msra.mxu0 %v674
        %735 = vmatpush.msra.mxu0 %v668
        %736 = vmatpush.msra.mxu0 %v662
        %737 = vmatpush.msra.mxu0 %v656
        %738 = vmatpush.msra.mxu0 %v650
        %739 = vmatpush.msra.mxu0 %v644
        %740 = vmatpush.msra.mxu0 %v638
        %741 = vmatpush.msra.mxu0 %v632
        %742 = vmatpush.msra.mxu0 %v626
        %743 = vmatpush.msra.mxu0 %v620
        %744 = vmatpush.msra.mxu0 %v614
        %745 = vmatpush.msra.mxu0 %v608
        %746 = vmatpush.msra.mxu0 %v602
        %747 = vmatmul.f32.gmra.mxu0 %v600
        %v748 = vpop.f32.mrf.mxu0
        %v749 = vadd.f32 %v700, %v748
        %750 = vdwg.mxu0
        %751 = vmatpush.msra.mxu0 %v693
        %752 = vmatpush.msra.mxu0 %v687
        %753 = vmatpush.msra.mxu0 %v681
        %754 = vmatpush.msra.mxu0 %v675
        %755 = vmatpush.msra.mxu0 %v669
        %756 = vmatpush.msra.mxu0 %v663
        %757 = vmatpush.msra.mxu0 %v657
        %758 = vmatpush.msra.mxu0 %v651
        %759 = vmatpush.msra.mxu0 %v645
        %760 = vmatpush.msra.mxu0 %v639
        %761 = vmatpush.msra.mxu0 %v633
        %762 = vmatpush.msra.mxu0 %v627
        %763 = vmatpush.msra.mxu0 %v621
        %764 = vmatpush.msra.mxu0 %v615
        %765 = vmatpush.msra.mxu0 %v609
        %766 = vmatpush.msra.mxu0 %v603
        %767 = vmatmul.f32.gmra.mxu0 %v600
        %v768 = vpop.f32.mrf.mxu0
        %v769 = vadd.f32 %v701, %v768
        %770 = vdwg.mxu0
        %771 = vmatpush.msra.mxu0 %v694
        %772 = vmatpush.msra.mxu0 %v688
        %773 = vmatpush.msra.mxu0 %v682
        %774 = vmatpush.msra.mxu0 %v676
        %775 = vmatpush.msra.mxu0 %v670
        %776 = vmatpush.msra.mxu0 %v664
        %777 = vmatpush.msra.mxu0 %v658
        %778 = vmatpush.msra.mxu0 %v652
        %779 = vmatpush.msra.mxu0 %v646
        %780 = vmatpush.msra.mxu0 %v640
        %781 = vmatpush.msra.mxu0 %v634
        %782 = vmatpush.msra.mxu0 %v628
        %783 = vmatpush.msra.mxu0 %v622
        %784 = vmatpush.msra.mxu0 %v616
        %785 = vmatpush.msra.mxu0 %v610
        %786 = vmatpush.msra.mxu0 %v604
        %787 = vmatmul.f32.gmra.mxu0 %v600
        %v788 = vpop.f32.mrf.mxu0
        %v789 = vadd.f32 %v702, %v788
        %790 = vdwg.mxu0
        %791 = vmatpush.msra.mxu0 %v695
        %792 = vmatpush.msra.mxu0 %v689
        %793 = vmatpush.msra.mxu0 %v683
        %794 = vmatpush.msra.mxu0 %v677
        %795 = vmatpush.msra.mxu0 %v671
        %796 = vmatpush.msra.mxu0 %v665
        %797 = vmatpush.msra.mxu0 %v659
        %798 = vmatpush.msra.mxu0 %v653
        %799 = vmatpush.msra.mxu0 %v647
        %800 = vmatpush.msra.mxu0 %v641
        %801 = vmatpush.msra.mxu0 %v635
        %802 = vmatpush.msra.mxu0 %v629
        %803 = vmatpush.msra.mxu0 %v623
        %804 = vmatpush.msra.mxu0 %v617
        %805 = vmatpush.msra.mxu0 %v611
        %806 = vmatpush.msra.mxu0 %v605
        %807 = vmatmul.f32.gmra.mxu0 %v600
        %v808 = vpop.f32.mrf.mxu0
        %v809 = vadd.f32 %v703, %v808
        %810 = vdwg.mxu0
        %811 = vmatpush.msra.mxu0 %v696
        %812 = vmatpush.msra.mxu0 %v690
        %813 = vmatpush.msra.mxu0 %v684
        %814 = vmatpush.msra.mxu0 %v678
        %815 = vmatpush.msra.mxu0 %v672
        %816 = vmatpush.msra.mxu0 %v666
        %817 = vmatpush.msra.mxu0 %v660
        %818 = vmatpush.msra.mxu0 %v654
        %819 = vmatpush.msra.mxu0 %v648
        %820 = vmatpush.msra.mxu0 %v642
        %821 = vmatpush.msra.mxu0 %v636
        %822 = vmatpush.msra.mxu0 %v630
        %823 = vmatpush.msra.mxu0 %v624
        %824 = vmatpush.msra.mxu0 %v618
        %825 = vmatpush.msra.mxu0 %v612
        %826 = vmatpush.msra.mxu0 %v606
        %827 = vmatmul.f32.gmra.mxu0 %v600
        %v828 = vpop.f32.mrf.mxu0
        %v829 = vadd.f32 %v704, %v828
        %830 = vdwg.mxu0
        %v831 = vadd.f32 %v729, %v374
        %v832 = vadd.f32 %v749, %v375
        %v833 = vadd.f32 %v769, %v376
        %v834 = vadd.f32 %v789, %v377
        %v835 = vadd.f32 %v809, %v378
        %v836 = vadd.f32 %v829, %v379
        %v837 = vadd.f32 %v831, %v832
        %v838 = vadd.f32 %v837, %v833
        %v839 = vadd.f32 %v838, %v834
        %v840 = vadd.f32 %v839, %v835
        %v841 = vadd.f32 %v840, %v836
        %842 = vadd.xlane.f32.xlu0 %v841
        %v843 = vpop.xlane.xlu0 %842
        %v844 = vrcp.pop 768.0
        %v845 = vmul.f32 768.0, %v844
        %v846 = vsub.f32 1.0, %v845
        %v847 = vmul.f32 %v844, %v846
        %v848 = vadd.f32 %v844, %v847
        %vm849 = vweird.f32 %v844
        %v850 = vsel %vm849, %v844, %v848
        %v851 = vmul.f32 %v843, %v850
        %v852 = vmul.f32 %v831, %v831
        %v853 = vmul.f32 %v832, %v832
        %v854 = vmul.f32 %v833, %v833
        %v855 = vmul.f32 %v834, %v834
        %v856 = vmul.f32 %v835, %v835
        %v857 = vmul.f32 %v836, %v836
        %v858 = vadd.f32 %v852, %v853
        %v859 = vadd.f32 %v858, %v854
        %v860 = vadd.f32 %v859, %v855
        %v861 = vadd.f32 %v860, %v856
        %v862 = vadd.f32 %v861, %v857
        %863 = vadd.xlane.f32.xlu0 %v862
        %v864 = vpop.xlane.xlu0 %863
        %v865 = vmul.f32 %v864, %v850
        %v866 = vmul.f32 %v851, %v851
        %v867 = vsub.f32 %v865, %v866
        %v868 = vsub.f32 %v831, %v851
        %v869 = vsub.f32 %v832, %v851
        %v870 = vsub.f32 %v833, %v851
        %v871 = vsub.f32 %v834, %v851
        %v872 = vsub.f32 %v835, %v851
        %v873 = vsub.f32 %v836, %v851
        %v874 = vadd.f32 %v867, 1e-05
        %v875 = vrsqrt.pop %v874
        %v876 = vmul.f32 %v875, %v874
        %v877 = vmul.f32 %v876, %v875
        %v878 = vmul.f32 0.5, %v877
        %v879 = vsub.f32 1.5, %v878
        %v880 = vmul.f32 %v875, %v879
        %vm881 = vweird.f32 %v874
        %vm882 = vweird.f32 %v875
        %vm883 = vmor %vm881, %vm882
        %v884 = vsel %vm883, %v875, %v880
        %v885 = vmul.f32 %v868, %v884
        %v886 = vmul.f32 %v869, %v884
        %v887 = vmul.f32 %v870, %v884
        %v888 = vmul.f32 %v871, %v884
        %v889 = vmul.f32 %v872, %v884
        %v890 = vmul.f32 %v873, %v884
        %v891 = vld [vmem:[#allocation10] sm:$0x3f]
        %v893 = vperm.slane %v891, 0
        %v894 = vperm.slane %v891, 1
        %v895 = vperm.slane %v891, 2
        %v896 = vperm.slane %v891, 3
        %v897 = vperm.slane %v891, 4
        %v898 = vperm.slane %v891, 5
        %v905 = vmul.f32 %v885, %v893
        %v906 = vmul.f32 %v886, %v894
        %v907 = vmul.f32 %v887, %v895
        %v908 = vmul.f32 %v888, %v896
        %v909 = vmul.f32 %v889, %v897
        %v910 = vmul.f32 %v890, %v898
        %v911 = vld [vmem:[#allocation11] sm:$0x3f]
        %v913 = vperm.slane %v911, 0
        %v914 = vperm.slane %v911, 1
        %v915 = vperm.slane %v911, 2
        %v916 = vperm.slane %v911, 3
        %v917 = vperm.slane %v911, 4
        %v918 = vperm.slane %v911, 5
        %v925 = vadd.f32 %v905, %v913
        %v926 = vadd.f32 %v906, %v914
        %v927 = vadd.f32 %v907, %v915
        %v928 = vadd.f32 %v908, %v916
        %v929 = vadd.f32 %v909, %v917
        %v930 = vadd.f32 %v910, %v918
        %931 = vst [vmem:[%s373] sm:$0xff] %v925
        %932 = vst [vmem:[%s373 + $0x8] sm:$0xff] %v926
        %933 = vst [vmem:[%s373 + $0x10] sm:$0xff] %v927
        %934 = vst [vmem:[%s373 + $0x18] sm:$0xff] %v928
        %935 = vst [vmem:[%s373 + $0x20] sm:$0xff] %v929
        %936 = vst [vmem:[%s373 + $0x28] sm:$0xff] %v930
        %s937 = sand.u32 %s187, 1
        %s938 = scalar_lea.sflag [#allocation4], %s937
        %s939 = sand.u32 %s187, 1
        %s940 = smul.addr %s939, 48
        %s941 = scalar_lea.vmem [#allocation13], %s940
        // Predicated region
        $region73: #{tpu_custom_call.1} parent=47 // pred_check
          %p942 = pneg %p197
        $region74: #{tpu_custom_call.1} parent=47 // pred_check_branch
          %944 = sbr.rel (%p942) target = $region76
        $region75: #{tpu_custom_call.1} parent=47 // pred_region
          %946 = vsyncadd %s938, 0
          %s947 = smul.addr %s27, 6
          %s948 = smul.addr %s947, 8
          %s949 = scalar_lea.hbm %s7, %s948
          %s951 = sshll.u32 %s941, 4
          %s952 = int_to_ptr.vmem [resolvable:$true] %s951
          %s953 = sshll.u32 %s949, 4
          %s954 = int_to_ptr.hbm [resolvable:$true] %s953
          %956 = dma.vmem_to_hbm [thread:$0]  %s952, 768, %s954, %s938
        $region76: #{tpu_custom_call.1} parent=47 // pred_fallthru
          _
      $region48: #{tpu_custom_call.1} parent=5 // pred_fallthru
        _
      %p957 = scmp.le.s32.totalorder 2, %s22
      // Predicated region
      $region77: #{tpu_custom_call.1} parent=5 // pred_check
        %p958 = pneg %p957
      $region78: #{tpu_custom_call.1} parent=5 // pred_check_branch
        %960 = sbr.rel (%p958) target = $region80
      $region79: #{tpu_custom_call.1} parent=5 // pred_region
        %s961 = ssub.s32 %s22, 2
        // Predicated region
        $region81: #{tpu_custom_call.1} parent=79 // pred_check
          %p962 = pneg %p203
        $region82: #{tpu_custom_call.1} parent=79 // pred_check_branch
          %964 = sbr.rel (%p962) target = $region84
        $region83: #{tpu_custom_call.1} parent=79 // pred_region
          %s965 = sand.u32 %s188, 1
          %s966 = scalar_lea.sflag [#allocation4], %s965
          %s967 = sand.u32 %s188, 1
          %s968 = smul.addr %s967, 48
          %s969 = scalar_lea.vmem [#allocation13], %s968
          %971 = dma.done %s966, 768
        $region84: #{tpu_custom_call.1} parent=79 // pred_fallthru
          _
      $region80: #{tpu_custom_call.1} parent=5 // pred_fallthru
        _
    $region6: #{tpu_custom_call.1} parent=1 // loop_footer
      %s26 = sadd.s32 1, %s22
    $region7: #{tpu_custom_call.1} parent=1 // loop_footer_branch
      %21 = sbr.rel target = $region3
    $region8: #{tpu_custom_call.1} parent=1 // loop_exit
      _
    %972 = vsyncpa [#allocation3], 1
    %s973 = scalar_lea.sflag [#allocation3], 1
    %974 = vsyncpa %s973, 1
    %975 = vsyncpa [#allocation6], 1
    %976 = vsyncpa [#allocation9], 1
    %977 = vsyncpa [#allocation12], 1
    %978 = vsyncpa [#allocation4], 1
    %s979 = scalar_lea.sflag [#allocation4], 1
    %980 = vsyncpa %s979, 1

</llo_original>
